<compile_context>
chip_gen: v6e
topology: v6e:2x2x1
jax: 0.10.0
libtpu: 0.0.40
codegen_flags: <defaults>
</compile_context>

<pallas_src>
import jax
import jax.numpy as jnp
from jax.experimental import pallas as pl
from jax.experimental.pallas import tpu as pltpu


def _round_up(x, m):
    return (x + m - 1) // m * m


# ---------------------------------------------------------------------------
# Kernel
# ---------------------------------------------------------------------------
def dqn_ram_kernel(x_ref,
                   w1_ref, b1_ref,
                   w2_ref, b2_ref,
                   w3_ref, b3_ref,
                   w4_ref, b4_ref,
                   out_ref):
    x = x_ref[...]                                           # (TB, 4), f32

    # fc1: K=4 contraction on the VPU in full f32 (broadcast multiply-adds).
    # Avoids a nearly-empty MXU pass; exact vs the f32 reference.
    w1 = w1_ref[...]                                         # (4, 256), f32
    h = b1_ref[...]                                          # (1, 256), f32
    for k in range(x.shape[1]):                              # static, unrolled
        h = h + x[:, k:k + 1] * w1[k:k + 1, :]
    h = jnp.maximum(h, 0.0)

    # fc2 + ReLU: bf16 MXU operands, f32 accumulation, f32 VPU epilogue.
    h = jnp.dot(h.astype(w2_ref.dtype), w2_ref[...],
                preferred_element_type=jnp.float32) + b2_ref[...]
    h = jnp.maximum(h, 0.0)

    # fc3 + ReLU: output lane-padded 64 -> 128 (padded lanes are exactly 0).
    h = jnp.dot(h.astype(w3_ref.dtype), w3_ref[...],
                preferred_element_type=jnp.float32) + b3_ref[...]
    h = jnp.maximum(h, 0.0)

    # fc4: K padded 64 -> 128 with zero rows, N padded to 128 lanes.
    out = jnp.dot(h.astype(w4_ref.dtype), w4_ref[...],
                  preferred_element_type=jnp.float32) + b4_ref[...]
    out_ref[...] = out.astype(out_ref.dtype)


# ---------------------------------------------------------------------------
# Parameter prep: f32 fc1, bf16 fc2-4, hidden-64 and head padded to 128 lanes.
# ---------------------------------------------------------------------------
def prepare_params(params, weight_dtype=jnp.bfloat16, lane=128):
    num_actions = params["w4"].shape[1]
    hid3 = params["w3"].shape[1]                                 # 64
    hid3_pad = _round_up(max(hid3, lane), lane)                  # 128
    out_pad = _round_up(max(num_actions, lane), lane)            # 128

    prep = {}
    # fc1: keep in f32 (runs on the VPU; only ~4 KB so bf16 DMA savings are nil).
    prep["w1"] = params["w1"].astype(jnp.float32)
    prep["b1"] = params["b1"].astype(jnp.float32)

    # fc2: bf16 MXU operand, f32 bias.
    prep["w2"] = params["w2"].astype(weight_dtype)
    prep["b2"] = params["b2"].astype(jnp.float32)

    # fc3: pad output cols 64 -> 128 (zero cols; bias 0 + ReLU keeps them 0).
    prep["w3"] = jnp.pad(params["w3"],
                         ((0, 0), (0, hid3_pad - hid3))).astype(weight_dtype)
    prep["b3"] = jnp.pad(params["b3"],
                         ((0, 0), (0, hid3_pad - hid3))).astype(jnp.float32)

    # fc4: pad input rows 64 -> 128 (zero rows contribute 0) and head 9 -> 128.
    prep["w4"] = jnp.pad(params["w4"],
                         ((0, hid3_pad - hid3),
                          (0, out_pad - num_actions))).astype(weight_dtype)
    prep["b4"] = jnp.pad(params["b4"],
                         ((0, 0), (0, out_pad - num_actions))).astype(jnp.float32)

    return prep, num_actions, out_pad


# ---------------------------------------------------------------------------
# Wrapper
# ---------------------------------------------------------------------------
def dqn_ram_forward(x, prep, num_actions, out_pad, *, block_b=1024,
                    out_dtype=jnp.float32):
    """x: (B, in_features) f32; prep: output of prepare_params.

    out_dtype=jnp.bfloat16 halves the (store-dominated) output stream if the
    caller can tolerate bf16 Q-values (recommended on v5e at large batch).
    """
    B, f_in = x.shape

    # Batch tile: as large as affordable (per-grid-step overhead ~0.35 us, and
    # resident footprint is far below VMEM even at tb=2048). Multiple of 8
    # sublanes. When the batch is big enough, cap so the grid has >= 2 steps
    # so v7x's two TensorCores can split the batch (no-op on v5e/v6e).
    tb = min(block_b, _round_up(B, 8))
    if B > 8:
        tb = min(tb, _round_up(-(-B // 2), 8))
    b_pad = _round_up(B, tb)
    if b_pad != B:
        x = jnp.pad(x, ((0, b_pad - B), (0, 0)))

    args = (x,
            prep["w1"], prep["b1"],
            prep["w2"], prep["b2"],
            prep["w3"], prep["b3"],
            prep["w4"], prep["b4"])

    def resident_spec(shape):
        # Full-array block, constant block index -> stays VMEM-resident across
        # the batch grid (no per-step re-DMA). `shape` bound per call (no
        # late-binding of a loop variable).
        nd = len(shape)
        return pl.BlockSpec(shape, lambda i, _nd=nd: (0,) * _nd)

    in_specs = [pl.BlockSpec((tb, f_in), lambda i: (i, 0))]          # x tiles
    in_specs += [resident_spec(a.shape) for a in args[1:]]           # weights/biases
    out_specs = pl.BlockSpec((tb, out_pad), lambda i: (i, 0))        # lane-dense

    out = pl.pallas_call(
        dqn_ram_kernel,
        out_shape=jax.ShapeDtypeStruct((b_pad, out_pad), out_dtype),
        grid_spec=pltpu.PrefetchScalarGridSpec(
            num_scalar_prefetch=0,
            grid=(b_pad // tb,),
            in_specs=in_specs,
            out_specs=out_specs,
        ),
        compiler_params=pltpu.CompilerParams(
            dimension_semantics=("parallel",)),   # megacore split over batch
    )(*args)

    return out[:B, :num_actions]


# ---------------------------------------------------------------------------
# Init + references
# ---------------------------------------------------------------------------
def init_params(key, in_features=4, num_actions=9):
    """PyTorch-style init: U(-1/sqrt(fan_in), 1/sqrt(fan_in))."""
    sizes = [(in_features, 256), (256, 128), (128, 64), (64, num_actions)]
    params = {}
    keys = jax.random.split(key, 2 * len(sizes))
    for i, (fan_in, fan_out) in enumerate(sizes):
        bound = 1.0 / jnp.sqrt(jnp.float32(fan_in))
        params[f"w{i + 1}"] = jax.random.uniform(
            keys[2 * i], (fan_in, fan_out), minval=-bound, maxval=bound,
            dtype=jnp.float32)
        params[f"b{i + 1}"] = jax.random.uniform(
            keys[2 * i + 1], (1, fan_out), minval=-bound, maxval=bound,
            dtype=jnp.float32)
    return params


def reference_forward_f32(x, params):
    h = jnp.maximum(x @ params["w1"] + params["b1"], 0.0)
    h = jnp.maximum(h @ params["w2"] + params["b2"], 0.0)
    h = jnp.maximum(h @ params["w3"] + params["b3"], 0.0)
    return h @ params["w4"] + params["b4"]


def reference_forward_mixed(x, prep, num_actions):
    """Mirrors the kernel's numerics (f32 fc1, bf16 MXU operands, f32 acc)."""
    h = jnp.maximum(x @ prep["w1"] + prep["b1"], 0.0)
    h = jnp.maximum(jnp.dot(h.astype(jnp.bfloat16), prep["w2"],
                            preferred_element_type=jnp.float32) + prep["b2"], 0.0)
    h = jnp.maximum(jnp.dot(h.astype(jnp.bfloat16), prep["w3"],
                            preferred_element_type=jnp.float32) + prep["b3"], 0.0)
    out = jnp.dot(h.astype(jnp.bfloat16), prep["w4"],
                  preferred_element_type=jnp.float32) + prep["b4"]
    return out[:, :num_actions]


# ---------------------------------------------------------------------------
# Demo / self-test
# ---------------------------------------------------------------------------
if __name__ == "__main__":
    key = jax.random.PRNGKey(0)
    k_param, k_x1, k_x2 = jax.random.split(key, 3)

    in_features = 4
    num_actions = 9

    params = init_params(k_param, in_features=in_features, num_actions=num_actions)
    prep, n_act, out_pad = prepare_params(params)

    # Small inference-style batch (single grid step).
    x_small = jax.random.normal(k_x1, (8, in_features), dtype=jnp.float32)
    out_small = jax.block_until_ready(dqn_ram_forward(x_small, prep, n_act, out_pad))
    assert out_small.shape == (8, num_actions)
    assert jnp.allclose(out_small, reference_forward_mixed(x_small, prep, n_act),
                        atol=1e-2, rtol=1e-2), "mismatch vs mixed reference (small batch)"
    assert jnp.allclose(out_small, reference_forward_f32(x_small, params),
                        atol=5e-2, rtol=5e-2), "mismatch vs f32 reference (small batch)"

    # Training-style batch: ragged 200 rows -> 2 grid steps (megacore-friendly).
    x_big = jax.random.normal(k_x2, (200, in_features), dtype=jnp.float32)
    out_big = jax.block_until_ready(dqn_ram_forward(x_big, prep, n_act, out_pad))
    assert out_big.shape == (200, num_actions)
    assert jnp.allclose(out_big, reference_forward_mixed(x_big, prep, n_act),
                        atol=1e-2, rtol=1e-2), "mismatch vs mixed reference (big batch)"
    assert jnp.allclose(out_big, reference_forward_f32(x_big, params),
                        atol=5e-2, rtol=5e-2), "mismatch vs f32 reference (big batch)"

    # TODO(synk): fuse argmax / epsilon-greedy into the kernel (XLU is idle here)
    # so only (tb, small) indices / Q-max are written instead of a padded f32
    # slab, and keep weights resident across calls (cross-pallas_call prefetch)
    # for the per-env-step B~1 action-selection path.

    print("KERNEL_OK")
</pallas_src>

<mosaic_0001>
module attributes {stable_mosaic.version = 11 : i64} {
  func.func @dqn_ram_kernel(%arg0: i32, %arg1: memref<8x4xf32, #tpu.memory_space<vmem>>, %arg2: memref<4x256xf32, #tpu.memory_space<vmem>>, %arg3: memref<1x256xf32, #tpu.memory_space<vmem>>, %arg4: memref<256x128xbf16, #tpu.memory_space<vmem>>, %arg5: memref<1x128xf32, #tpu.memory_space<vmem>>, %arg6: memref<128x128xbf16, #tpu.memory_space<vmem>>, %arg7: memref<1x128xf32, #tpu.memory_space<vmem>>, %arg8: memref<128x128xbf16, #tpu.memory_space<vmem>>, %arg9: memref<1x128xf32, #tpu.memory_space<vmem>>, %arg10: memref<8x128xf32, #tpu.memory_space<vmem>>) attributes {dimension_semantics = [#tpu.dimension_semantics<parallel>], iteration_bounds = array<i64: 1>, scalar_prefetch = 0 : i64, scratch_operands = 0 : i64, tpu.core_type = #tpu.core_type<tc>, window_params = [{transform_indices = @transform_0, window_bounds = array<i64: 8, 4>}, {pipeline_mode = #tpu.pipeline_mode<synchronous>, transform_indices = @transform_1, window_bounds = array<i64: 4, 256>}, {pipeline_mode = #tpu.pipeline_mode<synchronous>, transform_indices = @transform_2, window_bounds = array<i64: 1, 256>}, {pipeline_mode = #tpu.pipeline_mode<synchronous>, transform_indices = @transform_3, window_bounds = array<i64: 256, 128>}, {pipeline_mode = #tpu.pipeline_mode<synchronous>, transform_indices = @transform_4, window_bounds = array<i64: 1, 128>}, {pipeline_mode = #tpu.pipeline_mode<synchronous>, transform_indices = @transform_5, window_bounds = array<i64: 128, 128>}, {pipeline_mode = #tpu.pipeline_mode<synchronous>, transform_indices = @transform_6, window_bounds = array<i64: 1, 128>}, {pipeline_mode = #tpu.pipeline_mode<synchronous>, transform_indices = @transform_7, window_bounds = array<i64: 128, 128>}, {pipeline_mode = #tpu.pipeline_mode<synchronous>, transform_indices = @transform_8, window_bounds = array<i64: 1, 128>}, {transform_indices = @transform_9, window_bounds = array<i64: 8, 128>}]} {
    %c0 = arith.constant 0 : index
    %c0_0 = arith.constant 0 : index
    %0 = vector.load %arg1[%c0, %c0_0] : memref<8x4xf32, #tpu.memory_space<vmem>>, vector<8x4xf32>
    %c0_1 = arith.constant 0 : index
    %c0_2 = arith.constant 0 : index
    %1 = vector.load %arg2[%c0_1, %c0_2] : memref<4x256xf32, #tpu.memory_space<vmem>>, vector<4x256xf32>
    %c0_3 = arith.constant 0 : index
    %c0_4 = arith.constant 0 : index
    %2 = vector.load %arg3[%c0_3, %c0_4] : memref<1x256xf32, #tpu.memory_space<vmem>>, vector<1x256xf32>
    %3 = vector.extract_strided_slice %0 {offsets = [0, 0], sizes = [8, 1], strides = [1, 1]} : vector<8x4xf32> to vector<8x1xf32>
    %4 = vector.extract_strided_slice %1 {offsets = [0, 0], sizes = [1, 256], strides = [1, 1]} : vector<4x256xf32> to vector<1x256xf32>
    %5 = vector.broadcast %3 : vector<8x1xf32> to vector<8x256xf32>
    %6 = vector.broadcast %4 : vector<1x256xf32> to vector<8x256xf32>
    %7 = arith.mulf %5, %6 : vector<8x256xf32>
    %8 = vector.broadcast %2 : vector<1x256xf32> to vector<8x256xf32>
    %9 = arith.addf %8, %7 : vector<8x256xf32>
    %10 = vector.extract_strided_slice %0 {offsets = [0, 1], sizes = [8, 1], strides = [1, 1]} : vector<8x4xf32> to vector<8x1xf32>
    %11 = vector.extract_strided_slice %1 {offsets = [1, 0], sizes = [1, 256], strides = [1, 1]} : vector<4x256xf32> to vector<1x256xf32>
    %12 = vector.broadcast %10 : vector<8x1xf32> to vector<8x256xf32>
    %13 = vector.broadcast %11 : vector<1x256xf32> to vector<8x256xf32>
    %14 = arith.mulf %12, %13 : vector<8x256xf32>
    %15 = arith.addf %9, %14 : vector<8x256xf32>
    %16 = vector.extract_strided_slice %0 {offsets = [0, 2], sizes = [8, 1], strides = [1, 1]} : vector<8x4xf32> to vector<8x1xf32>
    %17 = vector.extract_strided_slice %1 {offsets = [2, 0], sizes = [1, 256], strides = [1, 1]} : vector<4x256xf32> to vector<1x256xf32>
    %18 = vector.broadcast %16 : vector<8x1xf32> to vector<8x256xf32>
    %19 = vector.broadcast %17 : vector<1x256xf32> to vector<8x256xf32>
    %20 = arith.mulf %18, %19 : vector<8x256xf32>
    %21 = arith.addf %15, %20 : vector<8x256xf32>
    %22 = vector.extract_strided_slice %0 {offsets = [0, 3], sizes = [8, 1], strides = [1, 1]} : vector<8x4xf32> to vector<8x1xf32>
    %23 = vector.extract_strided_slice %1 {offsets = [3, 0], sizes = [1, 256], strides = [1, 1]} : vector<4x256xf32> to vector<1x256xf32>
    %24 = vector.broadcast %22 : vector<8x1xf32> to vector<8x256xf32>
    %25 = vector.broadcast %23 : vector<1x256xf32> to vector<8x256xf32>
    %26 = arith.mulf %24, %25 : vector<8x256xf32>
    %27 = arith.addf %21, %26 : vector<8x256xf32>
    %cst = arith.constant 0.000000e+00 : f32
    %28 = vector.broadcast %cst : f32 to vector<8x256xf32>
    %29 = arith.maximumf %27, %28 : vector<8x256xf32>
    %30 = arith.truncf %29 : vector<8x256xf32> to vector<8x256xbf16>
    %c0_5 = arith.constant 0 : index
    %c0_6 = arith.constant 0 : index
    %31 = vector.load %arg4[%c0_5, %c0_6] : memref<256x128xbf16, #tpu.memory_space<vmem>>, vector<256x128xbf16>
    %cst_7 = arith.constant dense<0.000000e+00> : vector<8x128xf32>
    %32 = tpu.matmul %30, %31, %cst_7 {dimension_numbers = #tpu.dot_dimension_numbers<[1], [0], [0], [1], [0, 0, 1, 1], [], []>} : vector<8x256xbf16>, vector<256x128xbf16>, vector<8x128xf32> -> vector<8x128xf32>
    %c0_8 = arith.constant 0 : index
    %c0_9 = arith.constant 0 : index
    %33 = vector.load %arg5[%c0_8, %c0_9] : memref<1x128xf32, #tpu.memory_space<vmem>>, vector<1x128xf32>
    %34 = vector.broadcast %33 : vector<1x128xf32> to vector<8x128xf32>
    %35 = arith.addf %32, %34 : vector<8x128xf32>
    %cst_10 = arith.constant 0.000000e+00 : f32
    %36 = vector.broadcast %cst_10 : f32 to vector<8x128xf32>
    %37 = arith.maximumf %35, %36 : vector<8x128xf32>
    %38 = arith.truncf %37 : vector<8x128xf32> to vector<8x128xbf16>
    %c0_11 = arith.constant 0 : index
    %c0_12 = arith.constant 0 : index
    %39 = vector.load %arg6[%c0_11, %c0_12] : memref<128x128xbf16, #tpu.memory_space<vmem>>, vector<128x128xbf16>
    %cst_13 = arith.constant dense<0.000000e+00> : vector<8x128xf32>
    %40 = tpu.matmul %38, %39, %cst_13 {dimension_numbers = #tpu.dot_dimension_numbers<[1], [0], [0], [1], [0, 0, 1, 1], [], []>} : vector<8x128xbf16>, vector<128x128xbf16>, vector<8x128xf32> -> vector<8x128xf32>
    %c0_14 = arith.constant 0 : index
    %c0_15 = arith.constant 0 : index
    %41 = vector.load %arg7[%c0_14, %c0_15] : memref<1x128xf32, #tpu.memory_space<vmem>>, vector<1x128xf32>
    %42 = vector.broadcast %41 : vector<1x128xf32> to vector<8x128xf32>
    %43 = arith.addf %40, %42 : vector<8x128xf32>
    %cst_16 = arith.constant 0.000000e+00 : f32
    %44 = vector.broadcast %cst_16 : f32 to vector<8x128xf32>
    %45 = arith.maximumf %43, %44 : vector<8x128xf32>
    %46 = arith.truncf %45 : vector<8x128xf32> to vector<8x128xbf16>
    %c0_17 = arith.constant 0 : index
    %c0_18 = arith.constant 0 : index
    %47 = vector.load %arg8[%c0_17, %c0_18] : memref<128x128xbf16, #tpu.memory_space<vmem>>, vector<128x128xbf16>
    %cst_19 = arith.constant dense<0.000000e+00> : vector<8x128xf32>
    %48 = tpu.matmul %46, %47, %cst_19 {dimension_numbers = #tpu.dot_dimension_numbers<[1], [0], [0], [1], [0, 0, 1, 1], [], []>} : vector<8x128xbf16>, vector<128x128xbf16>, vector<8x128xf32> -> vector<8x128xf32>
    %c0_20 = arith.constant 0 : index
    %c0_21 = arith.constant 0 : index
    %49 = vector.load %arg9[%c0_20, %c0_21] : memref<1x128xf32, #tpu.memory_space<vmem>>, vector<1x128xf32>
    %50 = vector.broadcast %49 : vector<1x128xf32> to vector<8x128xf32>
    %51 = arith.addf %48, %50 : vector<8x128xf32>
    %c0_22 = arith.constant 0 : index
    %c0_23 = arith.constant 0 : index
    %52 = vector.load %arg10[%c0_22, %c0_23] : memref<8x128xf32, #tpu.memory_space<vmem>>, vector<8x128xf32>
    tpu.vector_store %arg10[%c0_22, %c0_23], %51 {strides = array<i32>} : memref<8x128xf32, #tpu.memory_space<vmem>>, vector<8x128xf32>,
    return
  }
  func.func @transform_0(%arg0: i32) -> (i32, i32) {
    %c0_i32 = arith.constant 0 : i32
    %c0_i32_0 = arith.constant 0 : i32
    return %arg0, %c0_i32 : i32, i32
  }
  func.func @transform_1(%arg0: i32) -> (i32, i32) {
    %c0_i32 = arith.constant 0 : i32
    %c0_i32_0 = arith.constant 0 : i32
    %c0_i32_1 = arith.constant 0 : i32
    return %c0_i32, %c0_i32_0 : i32, i32
  }
  func.func @transform_2(%arg0: i32) -> (i32, i32) {
    %c0_i32 = arith.constant 0 : i32
    %c0_i32_0 = arith.constant 0 : i32
    %c0_i32_1 = arith.constant 0 : i32
    return %c0_i32, %c0_i32_0 : i32, i32
  }
  func.func @transform_3(%arg0: i32) -> (i32, i32) {
    %c0_i32 = arith.constant 0 : i32
    %c0_i32_0 = arith.constant 0 : i32
    %c0_i32_1 = arith.constant 0 : i32
    return %c0_i32, %c0_i32_0 : i32, i32
  }
  func.func @transform_4(%arg0: i32) -> (i32, i32) {
    %c0_i32 = arith.constant 0 : i32
    %c0_i32_0 = arith.constant 0 : i32
    %c0_i32_1 = arith.constant 0 : i32
    return %c0_i32, %c0_i32_0 : i32, i32
  }
  func.func @transform_5(%arg0: i32) -> (i32, i32) {
    %c0_i32 = arith.constant 0 : i32
    %c0_i32_0 = arith.constant 0 : i32
    %c0_i32_1 = arith.constant 0 : i32
    return %c0_i32, %c0_i32_0 : i32, i32
  }
  func.func @transform_6(%arg0: i32) -> (i32, i32) {
    %c0_i32 = arith.constant 0 : i32
    %c0_i32_0 = arith.constant 0 : i32
    %c0_i32_1 = arith.constant 0 : i32
    return %c0_i32, %c0_i32_0 : i32, i32
  }
  func.func @transform_7(%arg0: i32) -> (i32, i32) {
    %c0_i32 = arith.constant 0 : i32
    %c0_i32_0 = arith.constant 0 : i32
    %c0_i32_1 = arith.constant 0 : i32
    return %c0_i32, %c0_i32_0 : i32, i32
  }
  func.func @transform_8(%arg0: i32) -> (i32, i32) {
    %c0_i32 = arith.constant 0 : i32
    %c0_i32_0 = arith.constant 0 : i32
    %c0_i32_1 = arith.constant 0 : i32
    return %c0_i32, %c0_i32_0 : i32, i32
  }
  func.func @transform_9(%arg0: i32) -> (i32, i32) {
    %c0_i32 = arith.constant 0 : i32
    %c0_i32_0 = arith.constant 0 : i32
    return %arg0, %c0_i32 : i32, i32
  }
}

</mosaic_0001>

<llo_original>
// kernel: tpu_custom_call.1
$region0: #{tpu_custom_call.1}
  #allocation0 [shape = 'u32[]', space=smem, size = 0x4, offset = 0x4, fixed_abs, tag = 'smem constant byte address 0x4 - core index']
  #allocation1 [shape = 'u32[144,128]{1,0:T(1,128)}', space=vmem, size = 0x12000, scoped, tag = 'internal scratch']
  %s0 = inlined_call_operand.vmem [shape: f32[8,4], index: 0, kind: input, shape index: {}]
  %s1 = inlined_call_operand.vmem [shape: f32[4,256], index: 1, kind: input, shape index: {}]
  %s2 = inlined_call_operand.vmem [shape: f32[1,256], index: 2, kind: input, shape index: {}]
  %s3 = inlined_call_operand.hbm [shape: bf16[256,128], index: 3, kind: input, shape index: {}]
  %s4 = inlined_call_operand.vmem [shape: f32[1,128], index: 4, kind: input, shape index: {}]
  %s5 = inlined_call_operand.hbm [shape: bf16[128,128], index: 5, kind: input, shape index: {}]
  %s6 = inlined_call_operand.vmem [shape: f32[1,128], index: 6, kind: input, shape index: {}]
  %s7 = inlined_call_operand.hbm [shape: bf16[128,128], index: 7, kind: input, shape index: {}]
  %s8 = inlined_call_operand.vmem [shape: f32[1,128], index: 8, kind: input, shape index: {}]
  %s9 = inlined_call_operand.hbm [shape: f32[8,128], index: 9, kind: output, shape index: {}]
  %s10 = sld [smem:[#allocation0]]
  $region58: #{tpu_custom_call.1} parent=0
    _
  %s12 = ssub.s32 1, %s10
  %s13 = scalar_select 0, %s12, %s10
  $region1: #{tpu_custom_call.1} parent=0
    #allocation2 [shape = 'u8[65536]{0}', space=vmem, size = 0x10000, scoped, tag = 'input window, operand 3, single buffered']
    #allocation3 [shape = 's32[1]{0}', space=sflag, size = 0x4, scoped, tag = 'scoped memory for tpu_custom_call.1']
    #allocation4 [shape = 's32[1]{0}', space=sflag, size = 0x4, scoped, tag = 'scoped memory for tpu_custom_call.1']
    #allocation5 [shape = 'u8[32768]{0}', space=vmem, size = 0x8000, scoped, tag = 'input window, operand 5, single buffered']
    #allocation6 [shape = 's32[1]{0}', space=sflag, size = 0x4, scoped, tag = 'scoped memory for tpu_custom_call.1']
    #allocation7 [shape = 'u8[32768]{0}', space=vmem, size = 0x8000, scoped, tag = 'input window, operand 7, single buffered']
    #allocation8 [shape = 'u8[4096]{0}', space=vmem, size = 0x1000, scoped, tag = 'output window, operand 0, single buffered']
    %14 = vsyncpa [#allocation3], 0
    %15 = vsyncpa [#allocation6], 0
    %16 = vsyncpa [#allocation4], 0
    // Predicated region
    $region2: #{tpu_custom_call.1} parent=1 // pred_check
      _
    $region3: #{tpu_custom_call.1} parent=1 // pred_check_branch
      %18 = sbr.rel (0) target = $region5
    $region4: #{tpu_custom_call.1} parent=1 // pred_region
      _
    $region5: #{tpu_custom_call.1} parent=1 // pred_fallthru
      _
    // Predicated region
    $region6: #{tpu_custom_call.1} parent=1 // pred_check
      _
    $region7: #{tpu_custom_call.1} parent=1 // pred_check_branch
      %20 = sbr.rel (0) target = $region9
    $region8: #{tpu_custom_call.1} parent=1 // pred_region
      _
    $region9: #{tpu_custom_call.1} parent=1 // pred_fallthru
      _
    // Predicated region
    $region10: #{tpu_custom_call.1} parent=1 // pred_check
      _
    $region11: #{tpu_custom_call.1} parent=1 // pred_check_branch
      %22 = sbr.rel (0) target = $region13
    $region12: #{tpu_custom_call.1} parent=1 // pred_region
      _
    $region13: #{tpu_custom_call.1} parent=1 // pred_fallthru
      _
    // Predicated region
    $region14: #{tpu_custom_call.1} parent=1 // pred_check
      _
    $region15: #{tpu_custom_call.1} parent=1 // pred_check_branch
      %24 = sbr.rel (0) target = $region17
    $region16: #{tpu_custom_call.1} parent=1 // pred_region
      %s26 = ssub.s32 2048, 2048
      %27 = vsyncadd [#allocation3], %s26
      %s28 = sshll.u32 [#allocation2], 4
      %s29 = int_to_ptr.vmem [resolvable:$true] %s28
      %34 = dma.hbm_to_vmem [thread:$0]  %s3, 2048, %s29, [#allocation3], 64, 64, 4
    $region17: #{tpu_custom_call.1} parent=1 // pred_fallthru
      _
    // Predicated region
    $region18: #{tpu_custom_call.1} parent=1 // pred_check
      _
    $region19: #{tpu_custom_call.1} parent=1 // pred_check_branch
      %36 = sbr.rel (0) target = $region21
    $region20: #{tpu_custom_call.1} parent=1 // pred_region
      _
    $region21: #{tpu_custom_call.1} parent=1 // pred_fallthru
      _
    // Predicated region
    $region22: #{tpu_custom_call.1} parent=1 // pred_check
      _
    $region23: #{tpu_custom_call.1} parent=1 // pred_check_branch
      %38 = sbr.rel (0) target = $region25
    $region24: #{tpu_custom_call.1} parent=1 // pred_region
      %s40 = ssub.s32 1024, 1024
      %41 = vsyncadd [#allocation6], %s40
      %s42 = sshll.u32 [#allocation5], 4
      %s43 = int_to_ptr.vmem [resolvable:$true] %s42
      %48 = dma.hbm_to_vmem [thread:$0]  %s5, 1024, %s43, [#allocation6], 64, 64, 4
    $region25: #{tpu_custom_call.1} parent=1 // pred_fallthru
      _
    // Predicated region
    $region26: #{tpu_custom_call.1} parent=1 // pred_check
      _
    $region27: #{tpu_custom_call.1} parent=1 // pred_check_branch
      %50 = sbr.rel (0) target = $region29
    $region28: #{tpu_custom_call.1} parent=1 // pred_region
      _
    $region29: #{tpu_custom_call.1} parent=1 // pred_fallthru
      _
    // Predicated region
    $region30: #{tpu_custom_call.1} parent=1 // pred_check
      _
    $region31: #{tpu_custom_call.1} parent=1 // pred_check_branch
      %52 = sbr.rel (0) target = $region33
    $region32: #{tpu_custom_call.1} parent=1 // pred_region
      %s54 = ssub.s32 1024, 1024
      %55 = vsyncadd [#allocation6], %s54
      %s56 = sshll.u32 [#allocation7], 4
      %s57 = int_to_ptr.vmem [resolvable:$true] %s56
      %62 = dma.hbm_to_vmem [thread:$0]  %s7, 1024, %s57, [#allocation6], 64, 64, 4
    $region33: #{tpu_custom_call.1} parent=1 // pred_fallthru
      _
    // Predicated region
    $region34: #{tpu_custom_call.1} parent=1 // pred_check
      _
    $region35: #{tpu_custom_call.1} parent=1 // pred_check_branch
      %64 = sbr.rel (0) target = $region37
    $region36: #{tpu_custom_call.1} parent=1 // pred_region
      _
    $region37: #{tpu_custom_call.1} parent=1 // pred_fallthru
      _
    // Predicated region
    $region38: #{tpu_custom_call.1} parent=1 // pred_check
      _
    $region39: #{tpu_custom_call.1} parent=1 // pred_check_branch
      %66 = sbr.rel (0) target = $region41
    $region40: #{tpu_custom_call.1} parent=1 // pred_region
      %67 = dma.done [#allocation3], 2048
    $region41: #{tpu_custom_call.1} parent=1 // pred_fallthru
      _
    // Predicated region
    $region42: #{tpu_custom_call.1} parent=1 // pred_check
      _
    $region43: #{tpu_custom_call.1} parent=1 // pred_check_branch
      %69 = sbr.rel (0) target = $region45
    $region44: #{tpu_custom_call.1} parent=1 // pred_region
      %70 = dma.done [#allocation6], 1024
    $region45: #{tpu_custom_call.1} parent=1 // pred_fallthru
      _
    // Predicated region
    $region46: #{tpu_custom_call.1} parent=1 // pred_check
      _
    $region47: #{tpu_custom_call.1} parent=1 // pred_check_branch
      %72 = sbr.rel (0) target = $region49
    $region48: #{tpu_custom_call.1} parent=1 // pred_region
      %73 = dma.done [#allocation6], 1024
    $region49: #{tpu_custom_call.1} parent=1 // pred_fallthru
      _
    %v75 = vld [vmem:[%s0] sm:$0xff]
    %v76 = vld [vmem:[%s1] sm:$0xff]
    %v77 = vld [vmem:[%s2] sm:$0x3]
    %79 = vset.pattern.permute.xlu0 0
    %80 = vperm.xlu0 %79, %v75
    %v81 = vpop.permute.xlu0 %80
    %v84 = vlaneseq
    %v85 = vshrl.u32 %v84, 7
    %v86 = vsub.s32 0, %v85
    %v87 = vrot.slane %v76, %v86
    %v88 = vlaneseq
    %v89 = vshrl.u32 %v88, 7
    %v90 = vsub.s32 4, %v89
    %v91 = vrot.slane %v76, %v90
    %v94 = vlaneseq
    %v95 = vshrl.u32 %v94, 7
    %v96 = vsub.s32 0, %v95
    %v97 = vrot.slane %v87, %v96
    %v98 = vlaneseq
    %v99 = vshrl.u32 %v98, 7
    %v100 = vsub.s32 0, %v99
    %v101 = vrot.slane %v91, %v100
    %v102 = vmul.f32 %v81, %v97
    %v103 = vmul.f32 %v81, %v101
    %v105 = vlaneseq
    %v106 = vshrl.u32 %v105, 7
    %v107 = vsub.s32 0, %v106
    %v108 = vrot.slane %v77, %v107
    %v109 = vlaneseq
    %v110 = vshrl.u32 %v109, 7
    %v111 = vsub.s32 1, %v110
    %v112 = vrot.slane %v77, %v111
    %v115 = vadd.f32 %v108, %v102
    %v116 = vadd.f32 %v112, %v103
    %117 = vset.pattern.permute.xlu0 1
    %118 = vperm.xlu0 %117, %v75
    %v119 = vpop.permute.xlu0 %118
    %v121 = vlaneseq
    %v122 = vshrl.u32 %v121, 7
    %v123 = vsub.s32 1, %v122
    %v124 = vrot.slane %v76, %v123
    %v125 = vlaneseq
    %v126 = vshrl.u32 %v125, 7
    %v127 = vsub.s32 5, %v126
    %v128 = vrot.slane %v76, %v127
    %v131 = vlaneseq
    %v132 = vshrl.u32 %v131, 7
    %v133 = vsub.s32 1, %v132
    %v134 = vrot.slane %v124, %v133
    %v135 = vlaneseq
    %v136 = vshrl.u32 %v135, 7
    %v137 = vsub.s32 1, %v136
    %v138 = vrot.slane %v128, %v137
    %v139 = vmul.f32 %v119, %v134
    %v140 = vmul.f32 %v119, %v138
    %v141 = vadd.f32 %v115, %v139
    %v142 = vadd.f32 %v116, %v140
    %143 = vset.pattern.permute.xlu0 2
    %144 = vperm.xlu0 %143, %v75
    %v145 = vpop.permute.xlu0 %144
    %v147 = vlaneseq
    %v148 = vshrl.u32 %v147, 7
    %v149 = vsub.s32 2, %v148
    %v150 = vrot.slane %v76, %v149
    %v151 = vlaneseq
    %v152 = vshrl.u32 %v151, 7
    %v153 = vsub.s32 6, %v152
    %v154 = vrot.slane %v76, %v153
    %v157 = vlaneseq
    %v158 = vshrl.u32 %v157, 7
    %v159 = vsub.s32 2, %v158
    %v160 = vrot.slane %v150, %v159
    %v161 = vlaneseq
    %v162 = vshrl.u32 %v161, 7
    %v163 = vsub.s32 2, %v162
    %v164 = vrot.slane %v154, %v163
    %v165 = vmul.f32 %v145, %v160
    %v166 = vmul.f32 %v145, %v164
    %v167 = vadd.f32 %v141, %v165
    %v168 = vadd.f32 %v142, %v166
    %169 = vset.pattern.permute.xlu0 3
    %170 = vperm.xlu0 %169, %v75
    %v171 = vpop.permute.xlu0 %170
    %v173 = vlaneseq
    %v174 = vshrl.u32 %v173, 7
    %v175 = vsub.s32 3, %v174
    %v176 = vrot.slane %v76, %v175
    %v177 = vlaneseq
    %v178 = vshrl.u32 %v177, 7
    %v179 = vsub.s32 7, %v178
    %v180 = vrot.slane %v76, %v179
    %v183 = vlaneseq
    %v184 = vshrl.u32 %v183, 7
    %v185 = vsub.s32 3, %v184
    %v186 = vrot.slane %v176, %v185
    %v187 = vlaneseq
    %v188 = vshrl.u32 %v187, 7
    %v189 = vsub.s32 3, %v188
    %v190 = vrot.slane %v180, %v189
    %v191 = vmul.f32 %v171, %v186
    %v192 = vmul.f32 %v171, %v190
    %v193 = vadd.f32 %v167, %v191
    %v194 = vadd.f32 %v168, %v192
    %v195 = vmax.f32 %v193, 0.0
    %v196 = vmax.f32 %v194, 0.0
    %v197 = vpack.c.bf16 %v195, %v195
    %v198 = vpack.c.bf16 %v196, %v196
    %v199 = vld [vmem:[#allocation2] sm:$0xf]
    %v200 = vld [vmem:[#allocation2 + $0x4] sm:$0xf]
    %v201 = vld [vmem:[#allocation2 + $0x8] sm:$0xf]
    %v202 = vld [vmem:[#allocation2 + $0xc] sm:$0xf]
    %v203 = vld [vmem:[#allocation2 + $0x10] sm:$0xf]
    %v204 = vld [vmem:[#allocation2 + $0x14] sm:$0xf]
    %v205 = vld [vmem:[#allocation2 + $0x18] sm:$0xf]
    %v206 = vld [vmem:[#allocation2 + $0x1c] sm:$0xf]
    %v207 = vld [vmem:[#allocation2 + $0x20] sm:$0xf]
    %v208 = vld [vmem:[#allocation2 + $0x24] sm:$0xf]
    %v209 = vld [vmem:[#allocation2 + $0x28] sm:$0xf]
    %v210 = vld [vmem:[#allocation2 + $0x2c] sm:$0xf]
    %v211 = vld [vmem:[#allocation2 + $0x30] sm:$0xf]
    %v212 = vld [vmem:[#allocation2 + $0x34] sm:$0xf]
    %v213 = vld [vmem:[#allocation2 + $0x38] sm:$0xf]
    %v214 = vld [vmem:[#allocation2 + $0x3c] sm:$0xf]
    %v215 = vld [vmem:[#allocation2 + $0x40] sm:$0xf]
    %v216 = vld [vmem:[#allocation2 + $0x44] sm:$0xf]
    %v217 = vld [vmem:[#allocation2 + $0x48] sm:$0xf]
    %v218 = vld [vmem:[#allocation2 + $0x4c] sm:$0xf]
    %v219 = vld [vmem:[#allocation2 + $0x50] sm:$0xf]
    %v220 = vld [vmem:[#allocation2 + $0x54] sm:$0xf]
    %v221 = vld [vmem:[#allocation2 + $0x58] sm:$0xf]
    %v222 = vld [vmem:[#allocation2 + $0x5c] sm:$0xf]
    %v223 = vld [vmem:[#allocation2 + $0x60] sm:$0xf]
    %v224 = vld [vmem:[#allocation2 + $0x64] sm:$0xf]
    %v225 = vld [vmem:[#allocation2 + $0x68] sm:$0xf]
    %v226 = vld [vmem:[#allocation2 + $0x6c] sm:$0xf]
    %v227 = vld [vmem:[#allocation2 + $0x70] sm:$0xf]
    %v228 = vld [vmem:[#allocation2 + $0x74] sm:$0xf]
    %v229 = vld [vmem:[#allocation2 + $0x78] sm:$0xf]
    %v230 = vld [vmem:[#allocation2 + $0x7c] sm:$0xf]
    %v231 = vld [vmem:[%s4] sm:$0x1]
    %v233 = vlaneseq
    %v234 = vshrl.u32 %v233, 7
    %v235 = vsub.s32 0, %v234
    %v236 = vrot.slane %v231, %v235
    %v270 = vunpack.c.l.b16 %v199
    %v271 = vunpack.c.l.b16 %v200
    %v272 = vunpack.c.l.b16 %v201
    %v273 = vunpack.c.l.b16 %v202
    %v274 = vunpack.c.l.b16 %v203
    %v275 = vunpack.c.l.b16 %v204
    %v276 = vunpack.c.l.b16 %v205
    %v277 = vunpack.c.l.b16 %v206
    %v278 = vunpack.c.l.b16 %v207
    %v279 = vunpack.c.l.b16 %v208
    %v280 = vunpack.c.l.b16 %v209
    %v281 = vunpack.c.l.b16 %v210
    %v282 = vunpack.c.l.b16 %v211
    %v283 = vunpack.c.l.b16 %v212
    %v284 = vunpack.c.l.b16 %v213
    %v285 = vunpack.c.l.b16 %v214
    %v286 = vunpack.c.l.b16 %v215
    %v287 = vunpack.c.l.b16 %v216
    %v288 = vunpack.c.l.b16 %v217
    %v289 = vunpack.c.l.b16 %v218
    %v290 = vunpack.c.l.b16 %v219
    %v291 = vunpack.c.l.b16 %v220
    %v292 = vunpack.c.l.b16 %v221
    %v293 = vunpack.c.l.b16 %v222
    %v294 = vunpack.c.l.b16 %v223
    %v295 = vunpack.c.l.b16 %v224
    %v296 = vunpack.c.l.b16 %v225
    %v297 = vunpack.c.l.b16 %v226
    %v298 = vunpack.c.l.b16 %v227
    %v299 = vunpack.c.l.b16 %v228
    %v300 = vunpack.c.l.b16 %v229
    %v301 = vunpack.c.l.b16 %v230
    %v302 = vpack.c.b16 %v271, %v270
    %v303 = vpack.c.b16 %v273, %v272
    %v304 = vpack.c.b16 %v275, %v274
    %v305 = vpack.c.b16 %v277, %v276
    %v306 = vpack.c.b16 %v279, %v278
    %v307 = vpack.c.b16 %v281, %v280
    %v308 = vpack.c.b16 %v283, %v282
    %v309 = vpack.c.b16 %v285, %v284
    %v310 = vpack.c.b16 %v287, %v286
    %v311 = vpack.c.b16 %v289, %v288
    %v312 = vpack.c.b16 %v291, %v290
    %v313 = vpack.c.b16 %v293, %v292
    %v314 = vpack.c.b16 %v295, %v294
    %v315 = vpack.c.b16 %v297, %v296
    %v316 = vpack.c.b16 %v299, %v298
    %v317 = vpack.c.b16 %v301, %v300
    %334 = vmatprep.subr.bf16.mxu0 0
    %335 = vmatpush1.bf16.msra.mxu0 %v309
    %336 = vmatprep.subr.bf16.mxu0 0
    %337 = vmatpush1.bf16.msra.mxu0 %v308
    %338 = vmatprep.subr.bf16.mxu0 0
    %339 = vmatpush1.bf16.msra.mxu0 %v307
    %340 = vmatprep.subr.bf16.mxu0 0
    %341 = vmatpush1.bf16.msra.mxu0 %v306
    %342 = vmatprep.subr.bf16.mxu0 0
    %343 = vmatpush1.bf16.msra.mxu0 %v305
    %344 = vmatprep.subr.bf16.mxu0 0
    %345 = vmatpush1.bf16.msra.mxu0 %v304
    %346 = vmatprep.subr.bf16.mxu0 0
    %347 = vmatpush1.bf16.msra.mxu0 %v303
    %348 = vmatprep.subr.bf16.mxu0 0
    %349 = vmatpush1.bf16.msra.mxu0 %v302
    %350 = vmatprep.subr.bf16.mxu0 0
    %351 = vmatpush2.bf16.msra.mxu0 %v317
    %352 = vmatprep.subr.bf16.mxu0 0
    %353 = vmatpush2.bf16.msra.mxu0 %v316
    %354 = vmatprep.subr.bf16.mxu0 0
    %355 = vmatpush2.bf16.msra.mxu0 %v315
    %356 = vmatprep.subr.bf16.mxu0 0
    %357 = vmatpush2.bf16.msra.mxu0 %v314
    %358 = vmatprep.subr.bf16.mxu0 0
    %359 = vmatpush2.bf16.msra.mxu0 %v313
    %360 = vmatprep.subr.bf16.mxu0 0
    %361 = vmatpush2.bf16.msra.mxu0 %v312
    %362 = vmatprep.subr.bf16.mxu0 0
    %363 = vmatpush2.bf16.msra.mxu0 %v311
    %364 = vmatprep.subr.bf16.mxu0 0
    %365 = vmatpush2.bf16.msra.mxu0 %v310
    %366 = vmatprep.mubr.bf16.mxu0 %v198
    %367 = vmatmul.mubr.bf16.gmra.mxu0 %v197
    %v368 = vpop.f32.mrf.mxu0
    %v369 = vadd.f32 %v236, %v368
    %v370 = vpop.f32.mrf.mxu0
    %v371 = vpop.f32.mrf.mxu0
    %v372 = vpop.f32.mrf.mxu0
    %373 = vdwg.mxu0
    %v374 = vmax.f32 %v369, 0.0
    %v375 = vpack.c.bf16 %v374, %v374
    %v376 = vld [vmem:[#allocation5] sm:$0xf]
    %v377 = vld [vmem:[#allocation5 + $0x4] sm:$0xf]
    %v378 = vld [vmem:[#allocation5 + $0x8] sm:$0xf]
    %v379 = vld [vmem:[#allocation5 + $0xc] sm:$0xf]
    %v380 = vld [vmem:[#allocation5 + $0x10] sm:$0xf]
    %v381 = vld [vmem:[#allocation5 + $0x14] sm:$0xf]
    %v382 = vld [vmem:[#allocation5 + $0x18] sm:$0xf]
    %v383 = vld [vmem:[#allocation5 + $0x1c] sm:$0xf]
    %v384 = vld [vmem:[#allocation5 + $0x20] sm:$0xf]
    %v385 = vld [vmem:[#allocation5 + $0x24] sm:$0xf]
    %v386 = vld [vmem:[#allocation5 + $0x28] sm:$0xf]
    %v387 = vld [vmem:[#allocation5 + $0x2c] sm:$0xf]
    %v388 = vld [vmem:[#allocation5 + $0x30] sm:$0xf]
    %v389 = vld [vmem:[#allocation5 + $0x34] sm:$0xf]
    %v390 = vld [vmem:[#allocation5 + $0x38] sm:$0xf]
    %v391 = vld [vmem:[#allocation5 + $0x3c] sm:$0xf]
    %v392 = vld [vmem:[%s6] sm:$0x1]
    %v394 = vlaneseq
    %v395 = vshrl.u32 %v394, 7
    %v396 = vsub.s32 0, %v395
    %v397 = vrot.slane %v392, %v396
    %v415 = vunpack.c.l.b16 %v376
    %v416 = vunpack.c.l.b16 %v377
    %v417 = vunpack.c.l.b16 %v378
    %v418 = vunpack.c.l.b16 %v379
    %v419 = vunpack.c.l.b16 %v380
    %v420 = vunpack.c.l.b16 %v381
    %v421 = vunpack.c.l.b16 %v382
    %v422 = vunpack.c.l.b16 %v383
    %v423 = vunpack.c.l.b16 %v384
    %v424 = vunpack.c.l.b16 %v385
    %v425 = vunpack.c.l.b16 %v386
    %v426 = vunpack.c.l.b16 %v387
    %v427 = vunpack.c.l.b16 %v388
    %v428 = vunpack.c.l.b16 %v389
    %v429 = vunpack.c.l.b16 %v390
    %v430 = vunpack.c.l.b16 %v391
    %v431 = vpack.c.b16 %v416, %v415
    %v432 = vpack.c.b16 %v418, %v417
    %v433 = vpack.c.b16 %v420, %v419
    %v434 = vpack.c.b16 %v422, %v421
    %v435 = vpack.c.b16 %v424, %v423
    %v436 = vpack.c.b16 %v426, %v425
    %v437 = vpack.c.b16 %v428, %v427
    %v438 = vpack.c.b16 %v430, %v429
    %447 = vmatprep.subr.bf16.mxu0 0
    %448 = vmatpush1.bf16.msra.mxu0 %v438
    %449 = vmatprep.subr.bf16.mxu0 0
    %450 = vmatpush1.bf16.msra.mxu0 %v437
    %451 = vmatprep.subr.bf16.mxu0 0
    %452 = vmatpush1.bf16.msra.mxu0 %v436
    %453 = vmatprep.subr.bf16.mxu0 0
    %454 = vmatpush1.bf16.msra.mxu0 %v435
    %455 = vmatprep.subr.bf16.mxu0 0
    %456 = vmatpush1.bf16.msra.mxu0 %v434
    %457 = vmatprep.subr.bf16.mxu0 0
    %458 = vmatpush1.bf16.msra.mxu0 %v433
    %459 = vmatprep.subr.bf16.mxu0 0
    %460 = vmatpush1.bf16.msra.mxu0 %v432
    %461 = vmatprep.subr.bf16.mxu0 0
    %462 = vmatpush1.bf16.msra.mxu0 %v431
    %463 = vmatprep.subr.bf16.mxu0 0
    %464 = vmatpush2.bf16.msra.mxu0 0
    %465 = vmatprep.subr.bf16.mxu0 0
    %466 = vmatpush2.bf16.msra.mxu0 0
    %467 = vmatprep.subr.bf16.mxu0 0
    %468 = vmatpush2.bf16.msra.mxu0 0
    %469 = vmatprep.subr.bf16.mxu0 0
    %470 = vmatpush2.bf16.msra.mxu0 0
    %471 = vmatprep.subr.bf16.mxu0 0
    %472 = vmatpush2.bf16.msra.mxu0 0
    %473 = vmatprep.subr.bf16.mxu0 0
    %474 = vmatpush2.bf16.msra.mxu0 0
    %475 = vmatprep.subr.bf16.mxu0 0
    %476 = vmatpush2.bf16.msra.mxu0 0
    %477 = vmatprep.subr.bf16.mxu0 0
    %478 = vmatpush2.bf16.msra.mxu0 0
    %479 = vmatprep.mubr.bf16.mxu0 0
    %480 = vmatmul.mubr.bf16.gmra.mxu0 %v375
    %v481 = vpop.f32.mrf.mxu0
    %v482 = vadd.f32 %v397, %v481
    %v483 = vpop.f32.mrf.mxu0
    %v484 = vpop.f32.mrf.mxu0
    %v485 = vpop.f32.mrf.mxu0
    %486 = vdwg.mxu0
    %v487 = vmax.f32 %v482, 0.0
    %v488 = vpack.c.bf16 %v487, %v487
    %v489 = vld [vmem:[#allocation7] sm:$0xf]
    %v490 = vld [vmem:[#allocation7 + $0x4] sm:$0xf]
    %v491 = vld [vmem:[#allocation7 + $0x8] sm:$0xf]
    %v492 = vld [vmem:[#allocation7 + $0xc] sm:$0xf]
    %v493 = vld [vmem:[#allocation7 + $0x10] sm:$0xf]
    %v494 = vld [vmem:[#allocation7 + $0x14] sm:$0xf]
    %v495 = vld [vmem:[#allocation7 + $0x18] sm:$0xf]
    %v496 = vld [vmem:[#allocation7 + $0x1c] sm:$0xf]
    %v497 = vld [vmem:[#allocation7 + $0x20] sm:$0xf]
    %v498 = vld [vmem:[#allocation7 + $0x24] sm:$0xf]
    %v499 = vld [vmem:[#allocation7 + $0x28] sm:$0xf]
    %v500 = vld [vmem:[#allocation7 + $0x2c] sm:$0xf]
    %v501 = vld [vmem:[#allocation7 + $0x30] sm:$0xf]
    %v502 = vld [vmem:[#allocation7 + $0x34] sm:$0xf]
    %v503 = vld [vmem:[#allocation7 + $0x38] sm:$0xf]
    %v504 = vld [vmem:[#allocation7 + $0x3c] sm:$0xf]
    %v505 = vld [vmem:[%s8] sm:$0x1]
    %v507 = vlaneseq
    %v508 = vshrl.u32 %v507, 7
    %v509 = vsub.s32 0, %v508
    %v510 = vrot.slane %v505, %v509
    %v528 = vunpack.c.l.b16 %v489
    %v529 = vunpack.c.l.b16 %v490
    %v530 = vunpack.c.l.b16 %v491
    %v531 = vunpack.c.l.b16 %v492
    %v532 = vunpack.c.l.b16 %v493
    %v533 = vunpack.c.l.b16 %v494
    %v534 = vunpack.c.l.b16 %v495
    %v535 = vunpack.c.l.b16 %v496
    %v536 = vunpack.c.l.b16 %v497
    %v537 = vunpack.c.l.b16 %v498
    %v538 = vunpack.c.l.b16 %v499
    %v539 = vunpack.c.l.b16 %v500
    %v540 = vunpack.c.l.b16 %v501
    %v541 = vunpack.c.l.b16 %v502
    %v542 = vunpack.c.l.b16 %v503
    %v543 = vunpack.c.l.b16 %v504
    %v544 = vpack.c.b16 %v529, %v528
    %v545 = vpack.c.b16 %v531, %v530
    %v546 = vpack.c.b16 %v533, %v532
    %v547 = vpack.c.b16 %v535, %v534
    %v548 = vpack.c.b16 %v537, %v536
    %v549 = vpack.c.b16 %v539, %v538
    %v550 = vpack.c.b16 %v541, %v540
    %v551 = vpack.c.b16 %v543, %v542
    %560 = vmatprep.subr.bf16.mxu0 0
    %561 = vmatpush1.bf16.msra.mxu0 %v551
    %562 = vmatprep.subr.bf16.mxu0 0
    %563 = vmatpush1.bf16.msra.mxu0 %v550
    %564 = vmatprep.subr.bf16.mxu0 0
    %565 = vmatpush1.bf16.msra.mxu0 %v549
    %566 = vmatprep.subr.bf16.mxu0 0
    %567 = vmatpush1.bf16.msra.mxu0 %v548
    %568 = vmatprep.subr.bf16.mxu0 0
    %569 = vmatpush1.bf16.msra.mxu0 %v547
    %570 = vmatprep.subr.bf16.mxu0 0
    %571 = vmatpush1.bf16.msra.mxu0 %v546
    %572 = vmatprep.subr.bf16.mxu0 0
    %573 = vmatpush1.bf16.msra.mxu0 %v545
    %574 = vmatprep.subr.bf16.mxu0 0
    %575 = vmatpush1.bf16.msra.mxu0 %v544
    %576 = vmatprep.subr.bf16.mxu0 0
    %577 = vmatpush2.bf16.msra.mxu0 0
    %578 = vmatprep.subr.bf16.mxu0 0
    %579 = vmatpush2.bf16.msra.mxu0 0
    %580 = vmatprep.subr.bf16.mxu0 0
    %581 = vmatpush2.bf16.msra.mxu0 0
    %582 = vmatprep.subr.bf16.mxu0 0
    %583 = vmatpush2.bf16.msra.mxu0 0
    %584 = vmatprep.subr.bf16.mxu0 0
    %585 = vmatpush2.bf16.msra.mxu0 0
    %586 = vmatprep.subr.bf16.mxu0 0
    %587 = vmatpush2.bf16.msra.mxu0 0
    %588 = vmatprep.subr.bf16.mxu0 0
    %589 = vmatpush2.bf16.msra.mxu0 0
    %590 = vmatprep.subr.bf16.mxu0 0
    %591 = vmatpush2.bf16.msra.mxu0 0
    %592 = vmatprep.mubr.bf16.mxu0 0
    %593 = vmatmul.mubr.bf16.gmra.mxu0 %v488
    %v594 = vpop.f32.mrf.mxu0
    %v595 = vadd.f32 %v510, %v594
    %v596 = vpop.f32.mrf.mxu0
    %v597 = vpop.f32.mrf.mxu0
    %v598 = vpop.f32.mrf.mxu0
    %599 = vdwg.mxu0
    %600 = vst [vmem:[#allocation8] sm:$0xff] %v595
    // Predicated region
    $region50: #{tpu_custom_call.1} parent=1 // pred_check
      _
    $region51: #{tpu_custom_call.1} parent=1 // pred_check_branch
      %602 = sbr.rel (0) target = $region53
    $region52: #{tpu_custom_call.1} parent=1 // pred_region
      %s604 = ssub.s32 128, 128
      %605 = vsyncadd [#allocation4], %s604
      %s607 = sshll.u32 [#allocation8], 4
      %s608 = int_to_ptr.vmem [resolvable:$true] %s607
      %610 = dma.vmem_to_hbm [thread:$0]  %s608, 128, %s9, [#allocation4]
    $region53: #{tpu_custom_call.1} parent=1 // pred_fallthru
      _
    // Predicated region
    $region54: #{tpu_custom_call.1} parent=1 // pred_check
      _
    $region55: #{tpu_custom_call.1} parent=1 // pred_check_branch
      %612 = sbr.rel (0) target = $region57
    $region56: #{tpu_custom_call.1} parent=1 // pred_region
      %613 = dma.done [#allocation4], 128
    $region57: #{tpu_custom_call.1} parent=1 // pred_fallthru
      _
    %614 = vsyncpa [#allocation3], 1
    %615 = vsyncpa [#allocation6], 1
    %616 = vsyncpa [#allocation4], 1

</llo_original>
